<compile_context>
chip_gen: v7x
topology: tpu7x:2x2x1
jax: 0.10.0
libtpu: 0.0.40
codegen_flags: <defaults>
</compile_context>

<pallas_src>
import jax
import jax.numpy as jnp
from jax import lax
from jax.experimental import pallas as pl
from jax.experimental.pallas import tpu as pltpu


def cbow_kernel(idx_ref, emb_ref, w_ref, b_ref, out_ref):
    # idx_ref: VMEM (tb, C) int32  -- context ids for this batch block
    # emb_ref: VMEM (V, D)         -- embedding table (f32 or bf16)
    # w_ref:   VMEM (D, V)         -- decode weight, pre-transposed in wrapper
    # b_ref:   VMEM (1, V)         -- decode bias
    # out_ref: VMEM (tb, V) f32    -- log-probs for this batch block
    tb, V = out_ref.shape
    C = idx_ref.shape[1]

    # Embedding gather + sum expressed as counts(one-hot-sum) @ table so the
    # reduction runs on the MXU.  Indices are assumed to lie in [0, V); an
    # out-of-range id silently contributes nothing (torch.nn.Embedding raises).
    lane_ids = lax.broadcasted_iota(jnp.int32, (tb, V), 1)
    idx = idx_ref[...]                                  # (tb, C) int32
    counts = jnp.zeros((tb, V), jnp.float32)
    for c in range(C):                                  # static unroll, C small
        counts = counts + (lane_ids == idx[:, c:c + 1]).astype(jnp.float32)

    # Sum of selected embedding rows: (tb, V) @ (V, D) -> (tb, D), f32 accum.
    # Counts are small integers (<= C), exact in bf16 for C <= 256, so the
    # table is fed to the MXU un-cast.
    summed = jnp.dot(counts.astype(emb_ref.dtype), emb_ref[...],
                     preferred_element_type=jnp.float32)

    # Decode linear: (tb, D) @ (D, V) -> (tb, V), f32 accumulation.
    logits = jnp.dot(summed.astype(w_ref.dtype), w_ref[...],
                     preferred_element_type=jnp.float32)
    logits = logits + b_ref[...].astype(jnp.float32)

    # log_softmax along the vocab dim.
    m = jnp.max(logits, axis=-1, keepdims=True)
    shifted = logits - m
    lse = jnp.log(jnp.sum(jnp.exp(shifted), axis=-1, keepdims=True))
    out_ref[...] = (shifted - lse).astype(out_ref.dtype)


def cbow_forward_batched(inputs, emb_table, dec_w, dec_b, *, block_b=256):
    """Batched CBOW forward.

    inputs:    (B, C) int   -- context word ids per example
    emb_table: (V, D)       -- nn.Embedding weight (f32 or bf16)
    dec_w:     (V, D)       -- nn.Linear weight, torch layout
    dec_b:     (V,)         -- nn.Linear bias
    returns:   (B, V) f32 log-probabilities
    """
    B, C = inputs.shape
    V, D = emb_table.shape
    assert dec_w.shape == (V, D) and dec_b.shape == (V,)
    assert block_b > 0 and block_b % 8 == 0, "block_b must be a multiple of 8"
    if emb_table.dtype == jnp.bfloat16:
        # one-hot-sum counts must stay exactly representable in the table dtype
        assert C <= 256, "bf16 counts are only exact for C <= 256"

    # Batch block: at least 8 (sublane), at most block_b; always a multiple of 8.
    b_ceil8 = ((B + 7) // 8) * 8
    tb = min(block_b, b_ceil8)
    b_pad = pl.cdiv(B, tb) * tb
    idx = jnp.zeros((b_pad, C), jnp.int32).at[:B].set(inputs.astype(jnp.int32))

    # One transpose in the wrapper (amortized over all grid steps) so the
    # kernel's decode matmul contracts the lane dim natively.
    w_t = jnp.transpose(dec_w)            # (D, V)
    bias2d = dec_b.reshape(1, V)

    # VMEM budget from actual resident bytes: tables (worst case double
    # buffered by the pipeline since their blocks are constant) + per-step
    # idx/out tiles (double buffered) + headroom; capped to be v7x-safe.
    def nbytes(shape, dtype):
        return int(jnp.prod(jnp.array(shape))) * jnp.dtype(dtype).itemsize
    table_bytes = (nbytes((V, D), emb_table.dtype)
                   + nbytes((D, V), w_t.dtype)
                   + nbytes((1, V), bias2d.dtype))
    tile_bytes = nbytes((tb, V), jnp.float32) + nbytes((tb, C), jnp.int32)
    vmem_limit = 2 * table_bytes + 2 * tile_bytes + (4 << 20)
    vmem_limit = int(min(max(vmem_limit, 8 << 20), 64 << 20))

    out = pl.pallas_call(
        cbow_kernel,
        out_shape=jax.ShapeDtypeStruct((b_pad, V), jnp.float32),
        grid_spec=pltpu.PrefetchScalarGridSpec(
            num_scalar_prefetch=0,
            grid=(b_pad // tb,),
            in_specs=[
                pl.BlockSpec((tb, C), lambda g: (g, 0)),   # context ids
                pl.BlockSpec((V, D), lambda g: (0, 0)),    # embedding table
                pl.BlockSpec((D, V), lambda g: (0, 0)),    # decode W (pre-T)
                pl.BlockSpec((1, V), lambda g: (0, 0)),    # decode bias
            ],
            out_specs=pl.BlockSpec((tb, V), lambda g: (g, 0)),
        ),
        compiler_params=pltpu.CompilerParams(
            dimension_semantics=("parallel",),     # batch axis -> megacore
            vmem_limit_bytes=vmem_limit,
        ),
    )(idx, emb_table, w_t, bias2d)
    return out[:B]


def cbow_forward(inputs, emb_table, dec_w, dec_b):
    """Module-exact path: inputs (C,) -> (1, V) log-probs."""
    return cbow_forward_batched(inputs.reshape(1, -1), emb_table, dec_w, dec_b)


if __name__ == "__main__":
    VOCAB = 128      # vocab_size (lane-aligned: multiple of 128)
    EMB_DIM = 32     # embedding_dim
    CTX = 8          # context words per example
    BATCH = 20       # batched examples per call (not a multiple of 8 on purpose)

    key = jax.random.PRNGKey(0)
    k_idx, k_emb, k_w, k_b, k_bidx = jax.random.split(key, 5)

    # Deterministic parameter init mirroring nn.Embedding / nn.Linear defaults.
    emb_table = jax.random.normal(k_emb, (VOCAB, EMB_DIM), dtype=jnp.float32)
    bound = 1.0 / (EMB_DIM ** 0.5)
    dec_w = jax.random.uniform(k_w, (VOCAB, EMB_DIM), jnp.float32, -bound, bound)
    dec_b = jax.random.uniform(k_b, (VOCAB,), jnp.float32, -bound, bound)

    def reference(idx_bc, emb, w, b):
        embeds = emb[idx_bc]                      # (B, C, D)
        summed = jnp.sum(embeds, axis=1)          # (B, D)
        logits = summed @ w.T + b                 # (B, V)
        return jax.nn.log_softmax(logits, axis=-1)

    # 1) module-exact single-example path: (C,) -> (1, V)
    inputs = jax.random.randint(k_idx, (CTX,), 0, VOCAB, dtype=jnp.int32)
    log_probs = jax.block_until_ready(cbow_forward(inputs, emb_table, dec_w, dec_b))
    ref1 = reference(inputs.reshape(1, -1), emb_table, dec_w, dec_b)
    assert log_probs.shape == (1, VOCAB)
    assert jnp.allclose(log_probs, ref1, atol=1e-4, rtol=1e-4)

    # 2) batched path, f32 parameters, default (large, clamped) batch block
    batch_idx = jax.random.randint(k_bidx, (BATCH, CTX), 0, VOCAB, dtype=jnp.int32)
    out_b = jax.block_until_ready(
        cbow_forward_batched(batch_idx, emb_table, dec_w, dec_b))
    ref_b = reference(batch_idx, emb_table, dec_w, dec_b)
    assert out_b.shape == (BATCH, VOCAB)
    assert jnp.allclose(out_b, ref_b, atol=1e-4, rtol=1e-4)

    # 3) same batch with a small block (exercises multi-step grid + padded tail)
    out_b8 = jax.block_until_ready(
        cbow_forward_batched(batch_idx, emb_table, dec_w, dec_b, block_b=8))
    assert jnp.allclose(out_b8, ref_b, atol=1e-4, rtol=1e-4)

    # 4) batched path, bf16 tables (halves DMA/VMEM; MXU consumes bf16 natively,
    #    f32 accumulation) -- looser tolerance due to bf16 input rounding.
    emb_bf = emb_table.astype(jnp.bfloat16)
    w_bf = dec_w.astype(jnp.bfloat16)
    b_bf = dec_b.astype(jnp.bfloat16)
    out_bf = jax.block_until_ready(
        cbow_forward_batched(batch_idx, emb_bf, w_bf, b_bf))
    ref_bf = reference(batch_idx, emb_bf.astype(jnp.float32),
                       w_bf.astype(jnp.float32), b_bf.astype(jnp.float32))
    assert out_bf.shape == (BATCH, VOCAB)
    assert jnp.allclose(out_bf, ref_bf, atol=5e-2, rtol=5e-2)

    print("KERNEL_OK")
</pallas_src>

<mosaic_0001>
module attributes {stable_mosaic.version = 11 : i64} {
  func.func @cbow_kernel(%arg0: i32, %arg1: memref<8x8xi32, #tpu.memory_space<vmem>>, %arg2: memref<128x32xf32, #tpu.memory_space<vmem>>, %arg3: memref<32x128xf32, #tpu.memory_space<vmem>>, %arg4: memref<1x128xf32, #tpu.memory_space<vmem>>, %arg5: memref<8x128xf32, #tpu.memory_space<vmem>>) attributes {dimension_semantics = [#tpu.dimension_semantics<parallel>], iteration_bounds = array<i64: 1>, scalar_prefetch = 0 : i64, scratch_operands = 0 : i64, tpu.core_type = #tpu.core_type<tc>, window_params = [{transform_indices = @transform_0, window_bounds = array<i64: 8, 8>}, {pipeline_mode = #tpu.pipeline_mode<synchronous>, transform_indices = @transform_1, window_bounds = array<i64: 128, 32>}, {pipeline_mode = #tpu.pipeline_mode<synchronous>, transform_indices = @transform_2, window_bounds = array<i64: 32, 128>}, {pipeline_mode = #tpu.pipeline_mode<synchronous>, transform_indices = @transform_3, window_bounds = array<i64: 1, 128>}, {transform_indices = @transform_4, window_bounds = array<i64: 8, 128>}]} {
    %0 = tpu.iota {dimensions = array<i32: 1>} : vector<8x128xi32>
    %c0 = arith.constant 0 : index
    %c0_0 = arith.constant 0 : index
    %1 = vector.load %arg1[%c0, %c0_0] : memref<8x8xi32, #tpu.memory_space<vmem>>, vector<8x8xi32>
    %cst = arith.constant 0.000000e+00 : f32
    %2 = vector.broadcast %cst : f32 to vector<8x128xf32>
    %3 = vector.extract_strided_slice %1 {offsets = [0, 0], sizes = [8, 1], strides = [1, 1]} : vector<8x8xi32> to vector<8x1xi32>
    %4 = vector.broadcast %3 : vector<8x1xi32> to vector<8x128xi32>
    %5 = arith.cmpi eq, %0, %4 : vector<8x128xi32>
    %6 = arith.extui %5 : vector<8x128xi1> to vector<8x128xi32>
    %7 = arith.sitofp %6 : vector<8x128xi32> to vector<8x128xf32>
    %8 = arith.addf %2, %7 : vector<8x128xf32>
    %9 = vector.extract_strided_slice %1 {offsets = [0, 1], sizes = [8, 1], strides = [1, 1]} : vector<8x8xi32> to vector<8x1xi32>
    %10 = vector.broadcast %9 : vector<8x1xi32> to vector<8x128xi32>
    %11 = arith.cmpi eq, %0, %10 : vector<8x128xi32>
    %12 = arith.extui %11 : vector<8x128xi1> to vector<8x128xi32>
    %13 = arith.sitofp %12 : vector<8x128xi32> to vector<8x128xf32>
    %14 = arith.addf %8, %13 : vector<8x128xf32>
    %15 = vector.extract_strided_slice %1 {offsets = [0, 2], sizes = [8, 1], strides = [1, 1]} : vector<8x8xi32> to vector<8x1xi32>
    %16 = vector.broadcast %15 : vector<8x1xi32> to vector<8x128xi32>
    %17 = arith.cmpi eq, %0, %16 : vector<8x128xi32>
    %18 = arith.extui %17 : vector<8x128xi1> to vector<8x128xi32>
    %19 = arith.sitofp %18 : vector<8x128xi32> to vector<8x128xf32>
    %20 = arith.addf %14, %19 : vector<8x128xf32>
    %21 = vector.extract_strided_slice %1 {offsets = [0, 3], sizes = [8, 1], strides = [1, 1]} : vector<8x8xi32> to vector<8x1xi32>
    %22 = vector.broadcast %21 : vector<8x1xi32> to vector<8x128xi32>
    %23 = arith.cmpi eq, %0, %22 : vector<8x128xi32>
    %24 = arith.extui %23 : vector<8x128xi1> to vector<8x128xi32>
    %25 = arith.sitofp %24 : vector<8x128xi32> to vector<8x128xf32>
    %26 = arith.addf %20, %25 : vector<8x128xf32>
    %27 = vector.extract_strided_slice %1 {offsets = [0, 4], sizes = [8, 1], strides = [1, 1]} : vector<8x8xi32> to vector<8x1xi32>
    %28 = vector.broadcast %27 : vector<8x1xi32> to vector<8x128xi32>
    %29 = arith.cmpi eq, %0, %28 : vector<8x128xi32>
    %30 = arith.extui %29 : vector<8x128xi1> to vector<8x128xi32>
    %31 = arith.sitofp %30 : vector<8x128xi32> to vector<8x128xf32>
    %32 = arith.addf %26, %31 : vector<8x128xf32>
    %33 = vector.extract_strided_slice %1 {offsets = [0, 5], sizes = [8, 1], strides = [1, 1]} : vector<8x8xi32> to vector<8x1xi32>
    %34 = vector.broadcast %33 : vector<8x1xi32> to vector<8x128xi32>
    %35 = arith.cmpi eq, %0, %34 : vector<8x128xi32>
    %36 = arith.extui %35 : vector<8x128xi1> to vector<8x128xi32>
    %37 = arith.sitofp %36 : vector<8x128xi32> to vector<8x128xf32>
    %38 = arith.addf %32, %37 : vector<8x128xf32>
    %39 = vector.extract_strided_slice %1 {offsets = [0, 6], sizes = [8, 1], strides = [1, 1]} : vector<8x8xi32> to vector<8x1xi32>
    %40 = vector.broadcast %39 : vector<8x1xi32> to vector<8x128xi32>
    %41 = arith.cmpi eq, %0, %40 : vector<8x128xi32>
    %42 = arith.extui %41 : vector<8x128xi1> to vector<8x128xi32>
    %43 = arith.sitofp %42 : vector<8x128xi32> to vector<8x128xf32>
    %44 = arith.addf %38, %43 : vector<8x128xf32>
    %45 = vector.extract_strided_slice %1 {offsets = [0, 7], sizes = [8, 1], strides = [1, 1]} : vector<8x8xi32> to vector<8x1xi32>
    %46 = vector.broadcast %45 : vector<8x1xi32> to vector<8x128xi32>
    %47 = arith.cmpi eq, %0, %46 : vector<8x128xi32>
    %48 = arith.extui %47 : vector<8x128xi1> to vector<8x128xi32>
    %49 = arith.sitofp %48 : vector<8x128xi32> to vector<8x128xf32>
    %50 = arith.addf %44, %49 : vector<8x128xf32>
    %c0_1 = arith.constant 0 : index
    %c0_2 = arith.constant 0 : index
    %51 = vector.load %arg2[%c0_1, %c0_2] : memref<128x32xf32, #tpu.memory_space<vmem>>, vector<128x32xf32>
    %cst_3 = arith.constant dense<0.000000e+00> : vector<8x32xf32>
    %52 = tpu.matmul %50, %51, %cst_3 {dimension_numbers = #tpu.dot_dimension_numbers<[1], [0], [0], [1], [0, 0, 1, 1], [], []>} : vector<8x128xf32>, vector<128x32xf32>, vector<8x32xf32> -> vector<8x32xf32>
    %c0_4 = arith.constant 0 : index
    %c0_5 = arith.constant 0 : index
    %53 = vector.load %arg3[%c0_4, %c0_5] : memref<32x128xf32, #tpu.memory_space<vmem>>, vector<32x128xf32>
    %cst_6 = arith.constant dense<0.000000e+00> : vector<8x128xf32>
    %54 = tpu.matmul %52, %53, %cst_6 {dimension_numbers = #tpu.dot_dimension_numbers<[1], [0], [0], [1], [0, 0, 1, 1], [], []>} : vector<8x32xf32>, vector<32x128xf32>, vector<8x128xf32> -> vector<8x128xf32>
    %c0_7 = arith.constant 0 : index
    %c0_8 = arith.constant 0 : index
    %55 = vector.load %arg4[%c0_7, %c0_8] : memref<1x128xf32, #tpu.memory_space<vmem>>, vector<1x128xf32>
    %56 = vector.broadcast %55 : vector<1x128xf32> to vector<8x128xf32>
    %57 = arith.addf %54, %56 : vector<8x128xf32>
    %cst_9 = arith.constant dense<0xFF800000> : vector<8xf32>
    %58 = vector.multi_reduction <maximumf>, %57, %cst_9 [1] : vector<8x128xf32> to vector<8xf32>
    %59 = vector.shape_cast %58 : vector<8xf32> to vector<8x1xf32>
    %60 = vector.broadcast %59 : vector<8x1xf32> to vector<8x128xf32>
    %61 = arith.subf %57, %60 : vector<8x128xf32>
    %62 = math.exp %61 : vector<8x128xf32>
    %cst_10 = arith.constant dense<0.000000e+00> : vector<8xf32>
    %63 = vector.multi_reduction <add>, %62, %cst_10 [1] : vector<8x128xf32> to vector<8xf32>
    %64 = vector.shape_cast %63 : vector<8xf32> to vector<8x1xf32>
    %65 = math.log %64 : vector<8x1xf32>
    %66 = vector.broadcast %65 : vector<8x1xf32> to vector<8x128xf32>
    %67 = arith.subf %61, %66 : vector<8x128xf32>
    %c0_11 = arith.constant 0 : index
    %c0_12 = arith.constant 0 : index
    %68 = vector.load %arg5[%c0_11, %c0_12] : memref<8x128xf32, #tpu.memory_space<vmem>>, vector<8x128xf32>
    tpu.vector_store %arg5[%c0_11, %c0_12], %67 {strides = array<i32>} : memref<8x128xf32, #tpu.memory_space<vmem>>, vector<8x128xf32>,
    return
  }
  func.func @transform_0(%arg0: i32) -> (i32, i32) {
    %c0_i32 = arith.constant 0 : i32
    %c0_i32_0 = arith.constant 0 : i32
    return %arg0, %c0_i32 : i32, i32
  }
  func.func @transform_1(%arg0: i32) -> (i32, i32) {
    %c0_i32 = arith.constant 0 : i32
    %c0_i32_0 = arith.constant 0 : i32
    %c0_i32_1 = arith.constant 0 : i32
    return %c0_i32, %c0_i32_0 : i32, i32
  }
  func.func @transform_2(%arg0: i32) -> (i32, i32) {
    %c0_i32 = arith.constant 0 : i32
    %c0_i32_0 = arith.constant 0 : i32
    %c0_i32_1 = arith.constant 0 : i32
    return %c0_i32, %c0_i32_0 : i32, i32
  }
  func.func @transform_3(%arg0: i32) -> (i32, i32) {
    %c0_i32 = arith.constant 0 : i32
    %c0_i32_0 = arith.constant 0 : i32
    %c0_i32_1 = arith.constant 0 : i32
    return %c0_i32, %c0_i32_0 : i32, i32
  }
  func.func @transform_4(%arg0: i32) -> (i32, i32) {
    %c0_i32 = arith.constant 0 : i32
    %c0_i32_0 = arith.constant 0 : i32
    return %arg0, %c0_i32 : i32, i32
  }
}

</mosaic_0001>

<llo_original>
// kernel: tpu_custom_call.1
$region0: #{tpu_custom_call.1}
  #allocation0 [shape = 'u32[]', space=smem, size = 0x4, offset = 0x4, fixed_abs, tag = 'smem constant byte address 0x4 - core index']
  #allocation1 [shape = 'u32[144,128]{1,0:T(1,128)}', space=vmem, size = 0x12000, scoped, tag = 'internal scratch']
  %s0 = inlined_call_operand.vmem [shape: s32[8,8], index: 0, kind: input, shape index: {}]
  %s1 = inlined_call_operand.vmem [shape: f32[128,32], index: 1, kind: input, shape index: {}]
  %s2 = inlined_call_operand.vmem [shape: f32[32,128], index: 2, kind: input, shape index: {}]
  %s3 = inlined_call_operand.vmem [shape: f32[1,128], index: 3, kind: input, shape index: {}]
  %s4 = inlined_call_operand.hbm [shape: f32[8,128], index: 4, kind: output, shape index: {}]
  %s5 = sld [smem:[#allocation0]]
  $region26: #{tpu_custom_call.1} parent=0
    _
  %s7 = ssub.s32 1, %s5
  %s8 = scalar_select 0, %s7, %s5
  $region1: #{tpu_custom_call.1} parent=0
    #allocation2 [shape = 'u8[4096]{0}', space=vmem, size = 0x1000, scoped, tag = 'output window, operand 0, single buffered']
    #allocation3 [shape = 's32[1]{0}', space=sflag, size = 0x4, scoped, tag = 'scoped memory for tpu_custom_call.1']
    %9 = vsyncpa [#allocation3], 0
    // Predicated region
    $region2: #{tpu_custom_call.1} parent=1 // pred_check
      _
    $region3: #{tpu_custom_call.1} parent=1 // pred_check_branch
      %11 = sbr.rel (0) target = $region5
    $region4: #{tpu_custom_call.1} parent=1 // pred_region
      _
    $region5: #{tpu_custom_call.1} parent=1 // pred_fallthru
      _
    // Predicated region
    $region6: #{tpu_custom_call.1} parent=1 // pred_check
      _
    $region7: #{tpu_custom_call.1} parent=1 // pred_check_branch
      %13 = sbr.rel (0) target = $region9
    $region8: #{tpu_custom_call.1} parent=1 // pred_region
      _
    $region9: #{tpu_custom_call.1} parent=1 // pred_fallthru
      _
    // Predicated region
    $region10: #{tpu_custom_call.1} parent=1 // pred_check
      _
    $region11: #{tpu_custom_call.1} parent=1 // pred_check_branch
      %15 = sbr.rel (0) target = $region13
    $region12: #{tpu_custom_call.1} parent=1 // pred_region
      _
    $region13: #{tpu_custom_call.1} parent=1 // pred_fallthru
      _
    // Predicated region
    $region14: #{tpu_custom_call.1} parent=1 // pred_check
      _
    $region15: #{tpu_custom_call.1} parent=1 // pred_check_branch
      %17 = sbr.rel (0) target = $region17
    $region16: #{tpu_custom_call.1} parent=1 // pred_region
      _
    $region17: #{tpu_custom_call.1} parent=1 // pred_fallthru
      _
    %v18 = vlaneseq
    %v19 = vand.u32 %v18, 127
    %v20 = vld [vmem:[%s0] sm:$0xff]
    %21 = vset.pattern.permute.xlu0 0
    %22 = vperm.xlu0 %21, %v20
    %v23 = vpop.permute.xlu0 %22
    %vm24 = vcmp.eq.s32.totalorder %v19, %v23
    %v25 = vsel %vm24, 1, 0
    %v26 = vcvt.s32.f32 %v25
    %v27 = vadd.f32 %v26, 0.0
    %28 = vset.pattern.permute.xlu0 1
    %29 = vperm.xlu0 %28, %v20
    %v30 = vpop.permute.xlu0 %29
    %vm31 = vcmp.eq.s32.totalorder %v19, %v30
    %v32 = vsel %vm31, 1, 0
    %v33 = vcvt.s32.f32 %v32
    %v34 = vadd.f32 %v27, %v33
    %35 = vset.pattern.permute.xlu0 2
    %36 = vperm.xlu0 %35, %v20
    %v37 = vpop.permute.xlu0 %36
    %vm38 = vcmp.eq.s32.totalorder %v19, %v37
    %v39 = vsel %vm38, 1, 0
    %v40 = vcvt.s32.f32 %v39
    %v41 = vadd.f32 %v34, %v40
    %42 = vset.pattern.permute.xlu0 3
    %43 = vperm.xlu0 %42, %v20
    %v44 = vpop.permute.xlu0 %43
    %vm45 = vcmp.eq.s32.totalorder %v19, %v44
    %v46 = vsel %vm45, 1, 0
    %v47 = vcvt.s32.f32 %v46
    %v48 = vadd.f32 %v41, %v47
    %49 = vset.pattern.permute.xlu0 4
    %50 = vperm.xlu0 %49, %v20
    %v51 = vpop.permute.xlu0 %50
    %vm52 = vcmp.eq.s32.totalorder %v19, %v51
    %v53 = vsel %vm52, 1, 0
    %v54 = vcvt.s32.f32 %v53
    %v55 = vadd.f32 %v48, %v54
    %56 = vset.pattern.permute.xlu0 5
    %57 = vperm.xlu0 %56, %v20
    %v58 = vpop.permute.xlu0 %57
    %vm59 = vcmp.eq.s32.totalorder %v19, %v58
    %v60 = vsel %vm59, 1, 0
    %v61 = vcvt.s32.f32 %v60
    %v62 = vadd.f32 %v55, %v61
    %63 = vset.pattern.permute.xlu0 6
    %64 = vperm.xlu0 %63, %v20
    %v65 = vpop.permute.xlu0 %64
    %vm66 = vcmp.eq.s32.totalorder %v19, %v65
    %v67 = vsel %vm66, 1, 0
    %v68 = vcvt.s32.f32 %v67
    %v69 = vadd.f32 %v62, %v68
    %70 = vset.pattern.permute.xlu0 7
    %71 = vperm.xlu0 %70, %v20
    %v72 = vpop.permute.xlu0 %71
    %vm73 = vcmp.eq.s32.totalorder %v19, %v72
    %v74 = vsel %vm73, 1, 0
    %v75 = vcvt.s32.f32 %v74
    %v76 = vadd.f32 %v69, %v75
    %v77 = vld [vmem:[%s1] sm:$0xff]
    %v78 = vld [vmem:[%s1 + $0x8] sm:$0xff]
    %v79 = vld [vmem:[%s1 + $0x10] sm:$0xff]
    %v80 = vld [vmem:[%s1 + $0x18] sm:$0xff]
    %v81 = vld [vmem:[%s1 + $0x20] sm:$0xff]
    %v82 = vld [vmem:[%s1 + $0x28] sm:$0xff]
    %v83 = vld [vmem:[%s1 + $0x30] sm:$0xff]
    %v84 = vld [vmem:[%s1 + $0x38] sm:$0xff]
    %v85 = vld [vmem:[%s1 + $0x40] sm:$0xff]
    %v86 = vld [vmem:[%s1 + $0x48] sm:$0xff]
    %v87 = vld [vmem:[%s1 + $0x50] sm:$0xff]
    %v88 = vld [vmem:[%s1 + $0x58] sm:$0xff]
    %v89 = vld [vmem:[%s1 + $0x60] sm:$0xff]
    %v90 = vld [vmem:[%s1 + $0x68] sm:$0xff]
    %v91 = vld [vmem:[%s1 + $0x70] sm:$0xff]
    %v92 = vld [vmem:[%s1 + $0x78] sm:$0xff]
    %93 = vmatprep.subr.mxu0 0.0
    %94 = vmatpush1.msra.mxu0 %v77
    %95 = vmatprep.subr.mxu0 0.0
    %96 = vmatpush1.msra.mxu0 %v78
    %97 = vmatprep.subr.mxu0 0.0
    %98 = vmatpush1.msra.mxu0 %v79
    %99 = vmatprep.subr.mxu0 0.0
    %100 = vmatpush1.msra.mxu0 %v80
    %101 = vmatprep.subr.mxu0 0.0
    %102 = vmatpush1.msra.mxu0 %v81
    %103 = vmatprep.subr.mxu0 0.0
    %104 = vmatpush1.msra.mxu0 %v82
    %105 = vmatprep.subr.mxu0 0.0
    %106 = vmatpush1.msra.mxu0 %v83
    %107 = vmatprep.subr.mxu0 0.0
    %108 = vmatpush1.msra.mxu0 %v84
    %109 = vmatprep.subr.mxu0 0.0
    %110 = vmatpush1.msra.mxu0 %v85
    %111 = vmatprep.subr.mxu0 0.0
    %112 = vmatpush1.msra.mxu0 %v86
    %113 = vmatprep.subr.mxu0 0.0
    %114 = vmatpush1.msra.mxu0 %v87
    %115 = vmatprep.subr.mxu0 0.0
    %116 = vmatpush1.msra.mxu0 %v88
    %117 = vmatprep.subr.mxu0 0.0
    %118 = vmatpush1.msra.mxu0 %v89
    %119 = vmatprep.subr.mxu0 0.0
    %120 = vmatpush1.msra.mxu0 %v90
    %121 = vmatprep.subr.mxu0 0.0
    %122 = vmatpush1.msra.mxu0 %v91
    %123 = vmatprep.subr.mxu0 0.0
    %124 = vmatpush1.msra.mxu0 %v92
    %125 = vmatprep.subr.mxu0 0.0
    %126 = vmatpush1.msra.mxu0 0.0
    %127 = vmatprep.subr.mxu0 0.0
    %128 = vmatpush1.msra.mxu0 0.0
    %129 = vmatprep.subr.mxu0 0.0
    %130 = vmatpush1.msra.mxu0 0.0
    %131 = vmatprep.subr.mxu0 0.0
    %132 = vmatpush1.msra.mxu0 0.0
    %133 = vmatprep.subr.mxu0 0.0
    %134 = vmatpush1.msra.mxu0 0.0
    %135 = vmatprep.subr.mxu0 0.0
    %136 = vmatpush1.msra.mxu0 0.0
    %137 = vmatprep.subr.mxu0 0.0
    %138 = vmatpush1.msra.mxu0 0.0
    %139 = vmatprep.subr.mxu0 0.0
    %140 = vmatpush1.msra.mxu0 0.0
    %141 = vmatprep.subr.mxu0 0.0
    %142 = vmatpush1.msra.mxu0 0.0
    %143 = vmatprep.subr.mxu0 0.0
    %144 = vmatpush1.msra.mxu0 0.0
    %145 = vmatprep.subr.mxu0 0.0
    %146 = vmatpush1.msra.mxu0 0.0
    %147 = vmatprep.subr.mxu0 0.0
    %148 = vmatpush1.msra.mxu0 0.0
    %149 = vmatprep.subr.mxu0 0.0
    %150 = vmatpush1.msra.mxu0 0.0
    %151 = vmatprep.subr.mxu0 0.0
    %152 = vmatpush1.msra.mxu0 0.0
    %153 = vmatprep.subr.mxu0 0.0
    %154 = vmatpush1.msra.mxu0 0.0
    %155 = vmatprep.subr.mxu0 0.0
    %156 = vmatpush1.msra.mxu0 0.0
    %157 = vmatprep.mubr.f32.mxu0 0.0
    %158 = vmatmul.mubr.f32.gmra.mrb[0].mxu0 %v76
    %v159 = vpop.f32.mrb[0].mxu0
    %v160 = vadd.f32 0.0, %v159
    %v161 = vpop.f32.mrb[0].mxu0
    %162 = vdwg.mxu0
    %v163 = vld [vmem:[%s2] sm:$0xff]
    %v164 = vld [vmem:[%s2 + $0x8] sm:$0xff]
    %v165 = vld [vmem:[%s2 + $0x10] sm:$0xff]
    %v166 = vld [vmem:[%s2 + $0x18] sm:$0xff]
    %v167 = vld [vmem:[%s3] sm:$0x1]
    %v169 = vlaneseq
    %v170 = vshrl.u32 %v169, 7
    %v171 = vsub.s32 0, %v170
    %v172 = vrot.slane %v167, %v171
    %vm174 = vcmask 261120
    %v176 = vsel %vm174, %v160, 0
    %178 = vmatprep.subr.mxu0 0.0
    %179 = vmatpush1.msra.mxu0 %v163
    %180 = vmatprep.subr.mxu0 0.0
    %181 = vmatpush1.msra.mxu0 %v164
    %182 = vmatprep.subr.mxu0 0.0
    %183 = vmatpush1.msra.mxu0 %v165
    %184 = vmatprep.subr.mxu0 0.0
    %185 = vmatpush1.msra.mxu0 %v166
    %186 = vmatprep.subr.mxu0 0.0
    %187 = vmatpush1.msra.mxu0 0.0
    %188 = vmatprep.subr.mxu0 0.0
    %189 = vmatpush1.msra.mxu0 0.0
    %190 = vmatprep.subr.mxu0 0.0
    %191 = vmatpush1.msra.mxu0 0.0
    %192 = vmatprep.subr.mxu0 0.0
    %193 = vmatpush1.msra.mxu0 0.0
    %194 = vmatprep.subr.mxu0 0.0
    %195 = vmatpush1.msra.mxu0 0.0
    %196 = vmatprep.subr.mxu0 0.0
    %197 = vmatpush1.msra.mxu0 0.0
    %198 = vmatprep.subr.mxu0 0.0
    %199 = vmatpush1.msra.mxu0 0.0
    %200 = vmatprep.subr.mxu0 0.0
    %201 = vmatpush1.msra.mxu0 0.0
    %202 = vmatprep.subr.mxu0 0.0
    %203 = vmatpush1.msra.mxu0 0.0
    %204 = vmatprep.subr.mxu0 0.0
    %205 = vmatpush1.msra.mxu0 0.0
    %206 = vmatprep.subr.mxu0 0.0
    %207 = vmatpush1.msra.mxu0 0.0
    %208 = vmatprep.subr.mxu0 0.0
    %209 = vmatpush1.msra.mxu0 0.0
    %210 = vmatprep.subr.mxu0 0.0
    %211 = vmatpush1.msra.mxu0 0.0
    %212 = vmatprep.subr.mxu0 0.0
    %213 = vmatpush1.msra.mxu0 0.0
    %214 = vmatprep.subr.mxu0 0.0
    %215 = vmatpush1.msra.mxu0 0.0
    %216 = vmatprep.subr.mxu0 0.0
    %217 = vmatpush1.msra.mxu0 0.0
    %218 = vmatprep.subr.mxu0 0.0
    %219 = vmatpush1.msra.mxu0 0.0
    %220 = vmatprep.subr.mxu0 0.0
    %221 = vmatpush1.msra.mxu0 0.0
    %222 = vmatprep.subr.mxu0 0.0
    %223 = vmatpush1.msra.mxu0 0.0
    %224 = vmatprep.subr.mxu0 0.0
    %225 = vmatpush1.msra.mxu0 0.0
    %226 = vmatprep.subr.mxu0 0.0
    %227 = vmatpush1.msra.mxu0 0.0
    %228 = vmatprep.subr.mxu0 0.0
    %229 = vmatpush1.msra.mxu0 0.0
    %230 = vmatprep.subr.mxu0 0.0
    %231 = vmatpush1.msra.mxu0 0.0
    %232 = vmatprep.subr.mxu0 0.0
    %233 = vmatpush1.msra.mxu0 0.0
    %234 = vmatprep.subr.mxu0 0.0
    %235 = vmatpush1.msra.mxu0 0.0
    %236 = vmatprep.subr.mxu0 0.0
    %237 = vmatpush1.msra.mxu0 0.0
    %238 = vmatprep.subr.mxu0 0.0
    %239 = vmatpush1.msra.mxu0 0.0
    %240 = vmatprep.subr.mxu0 0.0
    %241 = vmatpush1.msra.mxu0 0.0
    %242 = vmatprep.mubr.f32.mxu0 0.0
    %243 = vmatmul.mubr.f32.gmra.mrb[0].mxu0 %v176
    %v244 = vpop.f32.mrb[0].mxu0
    %v245 = vadd.f32 %v172, %v244
    %v246 = vpop.f32.mrb[0].mxu0
    %247 = vdwg.mxu0
    %248 = vmax.xlane.f32.xlu0 %v245
    %v249 = vpop.xlane.xlu0 %248
    %v250 = vsub.f32 %v245, %v249
    %v251 = vmul.f32 %v250, 1.442695
    %v252 = vpow.pop %v251
    %253 = vadd.xlane.f32.xlu0 %v252
    %v254 = vpop.xlane.xlu0 %253
    %v255 = vlog2.pop %v254
    %v256 = vmul.f32 %v255, 0.6931472
    %v257 = vsub.f32 %v250, %v256
    %258 = vst [vmem:[#allocation2] sm:$0xff] %v257
    // Predicated region
    $region18: #{tpu_custom_call.1} parent=1 // pred_check
      _
    $region19: #{tpu_custom_call.1} parent=1 // pred_check_branch
      %260 = sbr.rel (0) target = $region21
    $region20: #{tpu_custom_call.1} parent=1 // pred_region
      %s262 = ssub.s32 128, 128
      %263 = vsyncadd [#allocation3], %s262
      %s265 = sshll.u32 [#allocation2], 4
      %s266 = int_to_ptr.vmem [resolvable:$true] %s265
      %268 = dma.vmem_to_hbm [thread:$0]  %s266, 128, %s4, [#allocation3]
    $region21: #{tpu_custom_call.1} parent=1 // pred_fallthru
      _
    // Predicated region
    $region22: #{tpu_custom_call.1} parent=1 // pred_check
      _
    $region23: #{tpu_custom_call.1} parent=1 // pred_check_branch
      %270 = sbr.rel (0) target = $region25
    $region24: #{tpu_custom_call.1} parent=1 // pred_region
      %271 = dma.done [#allocation3], 128
    $region25: #{tpu_custom_call.1} parent=1 // pred_fallthru
      _
    %272 = vsyncpa [#allocation3], 1

</llo_original>
